<compile_context>
chip_gen: v7x
topology: tpu7x:2x2x1
jax: 0.10.0
libtpu: 0.0.40
codegen_flags: <defaults>
</compile_context>

<pallas_src>
import functools
import math

import jax
import jax.numpy as jnp
from jax.experimental import pallas as pl
from jax.experimental.pallas import tpu as pltpu


def _nf_list_kernel(x_ref, w_ref, u_ref, b_ref, ld_ref, hist_ref, *, num_layers):
    """One grid step == (one flow, one batch tile).

    x_ref    : (1, TB, D)      input points for this flow / batch tile (VMEM)
    w_ref    : (1, K, D)       planar-flow w per layer (VMEM, reused across tiles)
    u_ref    : (1, K, D)       planar-flow u per layer (VMEM, reused across tiles)
    b_ref    : (N, K)          planar-flow bias, whole array in SMEM
    ld_ref   : (1, 1, TB)      output log-density (lane-dense row)
    hist_ref : (1, K, TB, D)   output per-layer history (z after each layer)
    """
    flow = pl.program_id(0)

    z = x_ref[0]                                   # [TB, D] f32
    tb = z.shape[0]
    d = z.shape[1]
    logdet = jnp.zeros((tb, 1), jnp.float32)

    # K is small and static -> unrolled Python loop.
    for k in range(num_layers):
        w_k = w_ref[0, pl.ds(k, 1), :]             # [1, D]
        u_k = u_ref[0, pl.ds(k, 1), :]             # [1, D]
        b_k = b_ref[flow, k]                       # scalar (SMEM)

        # planar flow: z <- z + u * tanh(<w, z> + b)
        pre = jnp.sum(z * w_k, axis=-1, keepdims=True) + b_k   # [TB, 1]
        h = jnp.tanh(pre)                                       # [TB, 1]
        z = z + u_k * h                                          # [TB, D]

        # log|det J| = log|1 + <u, w> * (1 - tanh^2)|
        uw = jnp.sum(u_k * w_k, axis=-1, keepdims=True)          # [1, 1]
        psi = 1.0 - h * h                                        # [TB, 1]
        logdet = logdet + jnp.log(jnp.abs(1.0 + uw * psi))       # [TB, 1]

        # lane-dense contiguous slab store (full [TB, D] per layer).
        hist_ref[0, k] = z

    # base distribution: standard normal in D dims
    base_lp = (-0.5 * jnp.sum(z * z, axis=-1, keepdims=True)
               - 0.5 * d * math.log(2.0 * math.pi))              # [TB, 1]
    # single small relayout to a lane-dense (1, TB) row for the store
    ld_ref[0] = jnp.transpose(base_lp + logdet)                  # (1, TB)


def _pick_batch_tile(B, K, D, budget_bytes=24 * 1024 * 1024):
    """Pick batch tile TB: either the full B, or a multiple of 128 dividing B,
    sized so the double-buffered per-step f32 footprint (x + hist blocks) stays
    under `budget_bytes` (conservative w.r.t. v7x's 64 MiB VMEM per TensorCore)."""
    bytes_per_row = 2 * 4 * D * (K + 1)            # double-buffered x + hist rows
    tb_cap = max(128, budget_bytes // max(bytes_per_row, 1))
    if B <= tb_cap:
        return B
    tb = (tb_cap // 128) * 128
    while tb >= 128 and B % tb != 0:
        tb -= 128
    return tb if tb >= 128 and B % tb == 0 else B


def nf_list_forward(x, w, u, b):
    """x: [N, B, D]; w,u: [N, K, D]; b: [N, K, 1] -> (log_density [N, B], hist [N, B, K, D])."""
    N, B, D = x.shape
    K = w.shape[1]

    b_smem = jnp.reshape(b, (N, K)).astype(jnp.float32)
    TB = _pick_batch_tile(B, K, D)
    n_bt = B // TB

    kernel = functools.partial(_nf_list_kernel, num_layers=K)

    ld_row, hist_kbd = pl.pallas_call(
        kernel,
        grid=(N, n_bt),
        in_specs=[
            pl.BlockSpec((1, TB, D), lambda i, j: (i, j, 0)),
            pl.BlockSpec((1, K, D), lambda i, j: (i, 0, 0)),
            pl.BlockSpec((1, K, D), lambda i, j: (i, 0, 0)),
            pl.BlockSpec(memory_space=pltpu.MemorySpace.SMEM),
        ],
        out_specs=[
            pl.BlockSpec((1, 1, TB), lambda i, j: (i, 0, j)),
            pl.BlockSpec((1, K, TB, D), lambda i, j: (i, 0, j, 0)),
        ],
        out_shape=[
            jax.ShapeDtypeStruct((N, 1, B), jnp.float32),
            jax.ShapeDtypeStruct((N, K, B, D), jnp.float32),
        ],
        compiler_params=pltpu.CompilerParams(
            dimension_semantics=("parallel", "parallel"),
            vmem_limit_bytes=48 * 1024 * 1024,
        ),
    )(x, w, u, b_smem)

    log_density = ld_row[:, 0, :]                         # [N, B]
    hist = jnp.transpose(hist_kbd, (0, 2, 1, 3))          # [N, B, K, D]
    return log_density, hist


def nf_list_forward_ref(x, w, u, b):
    """Pure-JAX reference mirroring the torch semantics (per-flow log_prob + hist)."""
    N, B, D = x.shape
    K = w.shape[1]
    ld_list, hist_list = [], []
    for i in range(N):
        z = x[i]
        logdet = jnp.zeros((B,), jnp.float32)
        hist = []
        for k in range(K):
            w_k, u_k, b_k = w[i, k], u[i, k], b[i, k, 0]
            h = jnp.tanh(z @ w_k + b_k)                       # [B]
            z = z + u_k[None, :] * h[:, None]                 # [B, D]
            uw = jnp.sum(u_k * w_k)
            logdet = logdet + jnp.log(jnp.abs(1.0 + uw * (1.0 - h * h)))
            hist.append(z)
        base_lp = -0.5 * jnp.sum(z * z, axis=-1) - 0.5 * D * math.log(2.0 * math.pi)
        ld_list.append(base_lp + logdet)
        # torch.cat(hist).reshape(K, B, D).permute(1, 0, 2) -> [B, K, D]
        hist_list.append(jnp.transpose(jnp.stack(hist, axis=0), (1, 0, 2)))
    return jnp.stack(ld_list), jnp.stack(hist_list)


if __name__ == "__main__":
    N, B, D, K = 3, 8, 4, 5  # num flows, batch, point dim, flow layers

    key = jax.random.PRNGKey(0)
    kx, kw, ku, kb = jax.random.split(key, 4)
    x = jax.random.normal(kx, (N, B, D), dtype=jnp.float32)
    w = 0.3 * jax.random.normal(kw, (N, K, D), dtype=jnp.float32)
    u = 0.3 * jax.random.normal(ku, (N, K, D), dtype=jnp.float32)
    b = 0.1 * jax.random.normal(kb, (N, K, 1), dtype=jnp.float32)

    ld, hist = jax.jit(nf_list_forward)(x, w, u, b)
    jax.block_until_ready((ld, hist))

    ld_exp, hist_exp = nf_list_forward_ref(x, w, u, b)
    assert ld.shape == (N, B) and hist.shape == (N, B, K, D)
    assert jnp.allclose(ld, ld_exp, atol=1e-4, rtol=1e-4)
    assert jnp.allclose(hist, hist_exp, atol=1e-4, rtol=1e-4)

    print("KERNEL_OK")
</pallas_src>

<mosaic_0001>
module attributes {stable_mosaic.version = 11 : i64} {
  func.func @_nf_list_kernel(%arg0: i32, %arg1: i32, %arg2: memref<1x8x4xf32, #tpu.memory_space<vmem>>, %arg3: memref<1x5x4xf32, #tpu.memory_space<vmem>>, %arg4: memref<1x5x4xf32, #tpu.memory_space<vmem>>, %arg5: memref<3x5xf32, #tpu.memory_space<smem>>, %arg6: memref<1x1x8xf32, #tpu.memory_space<vmem>>, %arg7: memref<1x5x8x4xf32, #tpu.memory_space<vmem>>) attributes {dimension_semantics = [#tpu.dimension_semantics<parallel>, #tpu.dimension_semantics<parallel>], iteration_bounds = array<i64: 3, 1>, scalar_prefetch = 0 : i64, scratch_operands = 0 : i64, tpu.core_type = #tpu.core_type<tc>, window_params = [{transform_indices = @transform_0, window_bounds = array<i64: 1, 8, 4>}, {transform_indices = @transform_1, window_bounds = array<i64: 1, 5, 4>}, {transform_indices = @transform_2, window_bounds = array<i64: 1, 5, 4>}, {transform_indices = @transform_3, window_bounds = array<i64: 3, 5>}, {transform_indices = @transform_4, window_bounds = array<i64: 1, 1, 8>}, {transform_indices = @transform_5, window_bounds = array<i64: 1, 5, 8, 4>}]} {
    %c0 = arith.constant 0 : index
    %c0_0 = arith.constant 0 : index
    %c0_1 = arith.constant 0 : index
    %0 = vector.load %arg2[%c0, %c0_0, %c0_1] : memref<1x8x4xf32, #tpu.memory_space<vmem>>, vector<1x8x4xf32>
    %1 = vector.shape_cast %0 : vector<1x8x4xf32> to vector<8x4xf32>
    %cst = arith.constant 0.000000e+00 : f32
    %2 = vector.broadcast %cst : f32 to vector<8x1xf32>
    %c0_2 = arith.constant 0 : index
    %c0_3 = arith.constant 0 : index
    %c0_4 = arith.constant 0 : index
    %3 = vector.load %arg3[%c0_2, %c0_3, %c0_4] : memref<1x5x4xf32, #tpu.memory_space<vmem>>, vector<1x1x4xf32>
    %4 = vector.shape_cast %3 : vector<1x1x4xf32> to vector<1x4xf32>
    %c0_5 = arith.constant 0 : index
    %c0_6 = arith.constant 0 : index
    %c0_7 = arith.constant 0 : index
    %5 = vector.load %arg4[%c0_5, %c0_6, %c0_7] : memref<1x5x4xf32, #tpu.memory_space<vmem>>, vector<1x1x4xf32>
    %6 = vector.shape_cast %5 : vector<1x1x4xf32> to vector<1x4xf32>
    %7 = arith.index_cast %arg0 : i32 to index
    %c0_8 = arith.constant 0 : index
    %8 = memref.load %arg5[%7, %c0_8] : memref<3x5xf32, #tpu.memory_space<smem>>
    %9 = vector.broadcast %4 : vector<1x4xf32> to vector<8x4xf32>
    %10 = arith.mulf %1, %9 : vector<8x4xf32>
    %cst_9 = arith.constant dense<0.000000e+00> : vector<8xf32>
    %11 = vector.multi_reduction <add>, %10, %cst_9 [1] : vector<8x4xf32> to vector<8xf32>
    %12 = vector.shape_cast %11 : vector<8xf32> to vector<8x1xf32>
    %13 = vector.broadcast %8 : f32 to vector<8x1xf32>
    %14 = arith.addf %12, %13 : vector<8x1xf32>
    %15 = math.tanh %14 : vector<8x1xf32>
    %16 = vector.broadcast %6 : vector<1x4xf32> to vector<8x4xf32>
    %17 = vector.broadcast %15 : vector<8x1xf32> to vector<8x4xf32>
    %18 = arith.mulf %16, %17 : vector<8x4xf32>
    %19 = arith.addf %1, %18 : vector<8x4xf32>
    %20 = arith.mulf %6, %4 : vector<1x4xf32>
    %cst_10 = arith.constant dense<0.000000e+00> : vector<1xf32>
    %21 = vector.multi_reduction <add>, %20, %cst_10 [1] : vector<1x4xf32> to vector<1xf32>
    %22 = vector.shape_cast %21 : vector<1xf32> to vector<1x1xf32>
    %23 = arith.mulf %15, %15 : vector<8x1xf32>
    %cst_11 = arith.constant 1.000000e+00 : f32
    %24 = vector.broadcast %cst_11 : f32 to vector<8x1xf32>
    %25 = arith.subf %24, %23 : vector<8x1xf32>
    %26 = vector.broadcast %22 : vector<1x1xf32> to vector<8x1xf32>
    %27 = arith.mulf %26, %25 : vector<8x1xf32>
    %cst_12 = arith.constant 1.000000e+00 : f32
    %28 = vector.broadcast %cst_12 : f32 to vector<8x1xf32>
    %29 = arith.addf %28, %27 : vector<8x1xf32>
    %30 = math.absf %29 : vector<8x1xf32>
    %31 = math.log %30 : vector<8x1xf32>
    %32 = arith.addf %2, %31 : vector<8x1xf32>
    %c0_13 = arith.constant 0 : index
    %c0_14 = arith.constant 0 : index
    %c0_15 = arith.constant 0 : index
    %c0_16 = arith.constant 0 : index
    %33 = vector.load %arg7[%c0_13, %c0_14, %c0_15, %c0_16] : memref<1x5x8x4xf32, #tpu.memory_space<vmem>>, vector<1x1x8x4xf32>
    %34 = vector.shape_cast %33 : vector<1x1x8x4xf32> to vector<8x4xf32>
    %35 = vector.shape_cast %19 : vector<8x4xf32> to vector<1x1x8x4xf32>
    tpu.vector_store %arg7[%c0_13, %c0_14, %c0_15, %c0_16], %35 {strides = array<i32>} : memref<1x5x8x4xf32, #tpu.memory_space<vmem>>, vector<1x1x8x4xf32>,
    %c0_17 = arith.constant 0 : index
    %c1 = arith.constant 1 : index
    %c0_18 = arith.constant 0 : index
    %36 = vector.load %arg3[%c0_17, %c1, %c0_18] : memref<1x5x4xf32, #tpu.memory_space<vmem>>, vector<1x1x4xf32>
    %37 = vector.shape_cast %36 : vector<1x1x4xf32> to vector<1x4xf32>
    %c0_19 = arith.constant 0 : index
    %c1_20 = arith.constant 1 : index
    %c0_21 = arith.constant 0 : index
    %38 = vector.load %arg4[%c0_19, %c1_20, %c0_21] : memref<1x5x4xf32, #tpu.memory_space<vmem>>, vector<1x1x4xf32>
    %39 = vector.shape_cast %38 : vector<1x1x4xf32> to vector<1x4xf32>
    %40 = arith.index_cast %arg0 : i32 to index
    %c1_22 = arith.constant 1 : index
    %41 = memref.load %arg5[%40, %c1_22] : memref<3x5xf32, #tpu.memory_space<smem>>
    %42 = vector.broadcast %37 : vector<1x4xf32> to vector<8x4xf32>
    %43 = arith.mulf %19, %42 : vector<8x4xf32>
    %cst_23 = arith.constant dense<0.000000e+00> : vector<8xf32>
    %44 = vector.multi_reduction <add>, %43, %cst_23 [1] : vector<8x4xf32> to vector<8xf32>
    %45 = vector.shape_cast %44 : vector<8xf32> to vector<8x1xf32>
    %46 = vector.broadcast %41 : f32 to vector<8x1xf32>
    %47 = arith.addf %45, %46 : vector<8x1xf32>
    %48 = math.tanh %47 : vector<8x1xf32>
    %49 = vector.broadcast %39 : vector<1x4xf32> to vector<8x4xf32>
    %50 = vector.broadcast %48 : vector<8x1xf32> to vector<8x4xf32>
    %51 = arith.mulf %49, %50 : vector<8x4xf32>
    %52 = arith.addf %19, %51 : vector<8x4xf32>
    %53 = arith.mulf %39, %37 : vector<1x4xf32>
    %cst_24 = arith.constant dense<0.000000e+00> : vector<1xf32>
    %54 = vector.multi_reduction <add>, %53, %cst_24 [1] : vector<1x4xf32> to vector<1xf32>
    %55 = vector.shape_cast %54 : vector<1xf32> to vector<1x1xf32>
    %56 = arith.mulf %48, %48 : vector<8x1xf32>
    %cst_25 = arith.constant 1.000000e+00 : f32
    %57 = vector.broadcast %cst_25 : f32 to vector<8x1xf32>
    %58 = arith.subf %57, %56 : vector<8x1xf32>
    %59 = vector.broadcast %55 : vector<1x1xf32> to vector<8x1xf32>
    %60 = arith.mulf %59, %58 : vector<8x1xf32>
    %cst_26 = arith.constant 1.000000e+00 : f32
    %61 = vector.broadcast %cst_26 : f32 to vector<8x1xf32>
    %62 = arith.addf %61, %60 : vector<8x1xf32>
    %63 = math.absf %62 : vector<8x1xf32>
    %64 = math.log %63 : vector<8x1xf32>
    %65 = arith.addf %32, %64 : vector<8x1xf32>
    %c0_27 = arith.constant 0 : index
    %c1_28 = arith.constant 1 : index
    %c0_29 = arith.constant 0 : index
    %c0_30 = arith.constant 0 : index
    %66 = vector.load %arg7[%c0_27, %c1_28, %c0_29, %c0_30] : memref<1x5x8x4xf32, #tpu.memory_space<vmem>>, vector<1x1x8x4xf32>
    %67 = vector.shape_cast %66 : vector<1x1x8x4xf32> to vector<8x4xf32>
    %68 = vector.shape_cast %52 : vector<8x4xf32> to vector<1x1x8x4xf32>
    tpu.vector_store %arg7[%c0_27, %c1_28, %c0_29, %c0_30], %68 {strides = array<i32>} : memref<1x5x8x4xf32, #tpu.memory_space<vmem>>, vector<1x1x8x4xf32>,
    %c0_31 = arith.constant 0 : index
    %c2 = arith.constant 2 : index
    %c0_32 = arith.constant 0 : index
    %69 = vector.load %arg3[%c0_31, %c2, %c0_32] : memref<1x5x4xf32, #tpu.memory_space<vmem>>, vector<1x1x4xf32>
    %70 = vector.shape_cast %69 : vector<1x1x4xf32> to vector<1x4xf32>
    %c0_33 = arith.constant 0 : index
    %c2_34 = arith.constant 2 : index
    %c0_35 = arith.constant 0 : index
    %71 = vector.load %arg4[%c0_33, %c2_34, %c0_35] : memref<1x5x4xf32, #tpu.memory_space<vmem>>, vector<1x1x4xf32>
    %72 = vector.shape_cast %71 : vector<1x1x4xf32> to vector<1x4xf32>
    %73 = arith.index_cast %arg0 : i32 to index
    %c2_36 = arith.constant 2 : index
    %74 = memref.load %arg5[%73, %c2_36] : memref<3x5xf32, #tpu.memory_space<smem>>
    %75 = vector.broadcast %70 : vector<1x4xf32> to vector<8x4xf32>
    %76 = arith.mulf %52, %75 : vector<8x4xf32>
    %cst_37 = arith.constant dense<0.000000e+00> : vector<8xf32>
    %77 = vector.multi_reduction <add>, %76, %cst_37 [1] : vector<8x4xf32> to vector<8xf32>
    %78 = vector.shape_cast %77 : vector<8xf32> to vector<8x1xf32>
    %79 = vector.broadcast %74 : f32 to vector<8x1xf32>
    %80 = arith.addf %78, %79 : vector<8x1xf32>
    %81 = math.tanh %80 : vector<8x1xf32>
    %82 = vector.broadcast %72 : vector<1x4xf32> to vector<8x4xf32>
    %83 = vector.broadcast %81 : vector<8x1xf32> to vector<8x4xf32>
    %84 = arith.mulf %82, %83 : vector<8x4xf32>
    %85 = arith.addf %52, %84 : vector<8x4xf32>
    %86 = arith.mulf %72, %70 : vector<1x4xf32>
    %cst_38 = arith.constant dense<0.000000e+00> : vector<1xf32>
    %87 = vector.multi_reduction <add>, %86, %cst_38 [1] : vector<1x4xf32> to vector<1xf32>
    %88 = vector.shape_cast %87 : vector<1xf32> to vector<1x1xf32>
    %89 = arith.mulf %81, %81 : vector<8x1xf32>
    %cst_39 = arith.constant 1.000000e+00 : f32
    %90 = vector.broadcast %cst_39 : f32 to vector<8x1xf32>
    %91 = arith.subf %90, %89 : vector<8x1xf32>
    %92 = vector.broadcast %88 : vector<1x1xf32> to vector<8x1xf32>
    %93 = arith.mulf %92, %91 : vector<8x1xf32>
    %cst_40 = arith.constant 1.000000e+00 : f32
    %94 = vector.broadcast %cst_40 : f32 to vector<8x1xf32>
    %95 = arith.addf %94, %93 : vector<8x1xf32>
    %96 = math.absf %95 : vector<8x1xf32>
    %97 = math.log %96 : vector<8x1xf32>
    %98 = arith.addf %65, %97 : vector<8x1xf32>
    %c0_41 = arith.constant 0 : index
    %c2_42 = arith.constant 2 : index
    %c0_43 = arith.constant 0 : index
    %c0_44 = arith.constant 0 : index
    %99 = vector.load %arg7[%c0_41, %c2_42, %c0_43, %c0_44] : memref<1x5x8x4xf32, #tpu.memory_space<vmem>>, vector<1x1x8x4xf32>
    %100 = vector.shape_cast %99 : vector<1x1x8x4xf32> to vector<8x4xf32>
    %101 = vector.shape_cast %85 : vector<8x4xf32> to vector<1x1x8x4xf32>
    tpu.vector_store %arg7[%c0_41, %c2_42, %c0_43, %c0_44], %101 {strides = array<i32>} : memref<1x5x8x4xf32, #tpu.memory_space<vmem>>, vector<1x1x8x4xf32>,
    %c0_45 = arith.constant 0 : index
    %c3 = arith.constant 3 : index
    %c0_46 = arith.constant 0 : index
    %102 = vector.load %arg3[%c0_45, %c3, %c0_46] : memref<1x5x4xf32, #tpu.memory_space<vmem>>, vector<1x1x4xf32>
    %103 = vector.shape_cast %102 : vector<1x1x4xf32> to vector<1x4xf32>
    %c0_47 = arith.constant 0 : index
    %c3_48 = arith.constant 3 : index
    %c0_49 = arith.constant 0 : index
    %104 = vector.load %arg4[%c0_47, %c3_48, %c0_49] : memref<1x5x4xf32, #tpu.memory_space<vmem>>, vector<1x1x4xf32>
    %105 = vector.shape_cast %104 : vector<1x1x4xf32> to vector<1x4xf32>
    %106 = arith.index_cast %arg0 : i32 to index
    %c3_50 = arith.constant 3 : index
    %107 = memref.load %arg5[%106, %c3_50] : memref<3x5xf32, #tpu.memory_space<smem>>
    %108 = vector.broadcast %103 : vector<1x4xf32> to vector<8x4xf32>
    %109 = arith.mulf %85, %108 : vector<8x4xf32>
    %cst_51 = arith.constant dense<0.000000e+00> : vector<8xf32>
    %110 = vector.multi_reduction <add>, %109, %cst_51 [1] : vector<8x4xf32> to vector<8xf32>
    %111 = vector.shape_cast %110 : vector<8xf32> to vector<8x1xf32>
    %112 = vector.broadcast %107 : f32 to vector<8x1xf32>
    %113 = arith.addf %111, %112 : vector<8x1xf32>
    %114 = math.tanh %113 : vector<8x1xf32>
    %115 = vector.broadcast %105 : vector<1x4xf32> to vector<8x4xf32>
    %116 = vector.broadcast %114 : vector<8x1xf32> to vector<8x4xf32>
    %117 = arith.mulf %115, %116 : vector<8x4xf32>
    %118 = arith.addf %85, %117 : vector<8x4xf32>
    %119 = arith.mulf %105, %103 : vector<1x4xf32>
    %cst_52 = arith.constant dense<0.000000e+00> : vector<1xf32>
    %120 = vector.multi_reduction <add>, %119, %cst_52 [1] : vector<1x4xf32> to vector<1xf32>
    %121 = vector.shape_cast %120 : vector<1xf32> to vector<1x1xf32>
    %122 = arith.mulf %114, %114 : vector<8x1xf32>
    %cst_53 = arith.constant 1.000000e+00 : f32
    %123 = vector.broadcast %cst_53 : f32 to vector<8x1xf32>
    %124 = arith.subf %123, %122 : vector<8x1xf32>
    %125 = vector.broadcast %121 : vector<1x1xf32> to vector<8x1xf32>
    %126 = arith.mulf %125, %124 : vector<8x1xf32>
    %cst_54 = arith.constant 1.000000e+00 : f32
    %127 = vector.broadcast %cst_54 : f32 to vector<8x1xf32>
    %128 = arith.addf %127, %126 : vector<8x1xf32>
    %129 = math.absf %128 : vector<8x1xf32>
    %130 = math.log %129 : vector<8x1xf32>
    %131 = arith.addf %98, %130 : vector<8x1xf32>
    %c0_55 = arith.constant 0 : index
    %c3_56 = arith.constant 3 : index
    %c0_57 = arith.constant 0 : index
    %c0_58 = arith.constant 0 : index
    %132 = vector.load %arg7[%c0_55, %c3_56, %c0_57, %c0_58] : memref<1x5x8x4xf32, #tpu.memory_space<vmem>>, vector<1x1x8x4xf32>
    %133 = vector.shape_cast %132 : vector<1x1x8x4xf32> to vector<8x4xf32>
    %134 = vector.shape_cast %118 : vector<8x4xf32> to vector<1x1x8x4xf32>
    tpu.vector_store %arg7[%c0_55, %c3_56, %c0_57, %c0_58], %134 {strides = array<i32>} : memref<1x5x8x4xf32, #tpu.memory_space<vmem>>, vector<1x1x8x4xf32>,
    %c0_59 = arith.constant 0 : index
    %c4 = arith.constant 4 : index
    %c0_60 = arith.constant 0 : index
    %135 = vector.load %arg3[%c0_59, %c4, %c0_60] : memref<1x5x4xf32, #tpu.memory_space<vmem>>, vector<1x1x4xf32>
    %136 = vector.shape_cast %135 : vector<1x1x4xf32> to vector<1x4xf32>
    %c0_61 = arith.constant 0 : index
    %c4_62 = arith.constant 4 : index
    %c0_63 = arith.constant 0 : index
    %137 = vector.load %arg4[%c0_61, %c4_62, %c0_63] : memref<1x5x4xf32, #tpu.memory_space<vmem>>, vector<1x1x4xf32>
    %138 = vector.shape_cast %137 : vector<1x1x4xf32> to vector<1x4xf32>
    %139 = arith.index_cast %arg0 : i32 to index
    %c4_64 = arith.constant 4 : index
    %140 = memref.load %arg5[%139, %c4_64] : memref<3x5xf32, #tpu.memory_space<smem>>
    %141 = vector.broadcast %136 : vector<1x4xf32> to vector<8x4xf32>
    %142 = arith.mulf %118, %141 : vector<8x4xf32>
    %cst_65 = arith.constant dense<0.000000e+00> : vector<8xf32>
    %143 = vector.multi_reduction <add>, %142, %cst_65 [1] : vector<8x4xf32> to vector<8xf32>
    %144 = vector.shape_cast %143 : vector<8xf32> to vector<8x1xf32>
    %145 = vector.broadcast %140 : f32 to vector<8x1xf32>
    %146 = arith.addf %144, %145 : vector<8x1xf32>
    %147 = math.tanh %146 : vector<8x1xf32>
    %148 = vector.broadcast %138 : vector<1x4xf32> to vector<8x4xf32>
    %149 = vector.broadcast %147 : vector<8x1xf32> to vector<8x4xf32>
    %150 = arith.mulf %148, %149 : vector<8x4xf32>
    %151 = arith.addf %118, %150 : vector<8x4xf32>
    %152 = arith.mulf %138, %136 : vector<1x4xf32>
    %cst_66 = arith.constant dense<0.000000e+00> : vector<1xf32>
    %153 = vector.multi_reduction <add>, %152, %cst_66 [1] : vector<1x4xf32> to vector<1xf32>
    %154 = vector.shape_cast %153 : vector<1xf32> to vector<1x1xf32>
    %155 = arith.mulf %147, %147 : vector<8x1xf32>
    %cst_67 = arith.constant 1.000000e+00 : f32
    %156 = vector.broadcast %cst_67 : f32 to vector<8x1xf32>
    %157 = arith.subf %156, %155 : vector<8x1xf32>
    %158 = vector.broadcast %154 : vector<1x1xf32> to vector<8x1xf32>
    %159 = arith.mulf %158, %157 : vector<8x1xf32>
    %cst_68 = arith.constant 1.000000e+00 : f32
    %160 = vector.broadcast %cst_68 : f32 to vector<8x1xf32>
    %161 = arith.addf %160, %159 : vector<8x1xf32>
    %162 = math.absf %161 : vector<8x1xf32>
    %163 = math.log %162 : vector<8x1xf32>
    %164 = arith.addf %131, %163 : vector<8x1xf32>
    %c0_69 = arith.constant 0 : index
    %c4_70 = arith.constant 4 : index
    %c0_71 = arith.constant 0 : index
    %c0_72 = arith.constant 0 : index
    %165 = vector.load %arg7[%c0_69, %c4_70, %c0_71, %c0_72] : memref<1x5x8x4xf32, #tpu.memory_space<vmem>>, vector<1x1x8x4xf32>
    %166 = vector.shape_cast %165 : vector<1x1x8x4xf32> to vector<8x4xf32>
    %167 = vector.shape_cast %151 : vector<8x4xf32> to vector<1x1x8x4xf32>
    tpu.vector_store %arg7[%c0_69, %c4_70, %c0_71, %c0_72], %167 {strides = array<i32>} : memref<1x5x8x4xf32, #tpu.memory_space<vmem>>, vector<1x1x8x4xf32>,
    %168 = arith.mulf %151, %151 : vector<8x4xf32>
    %cst_73 = arith.constant dense<0.000000e+00> : vector<8xf32>
    %169 = vector.multi_reduction <add>, %168, %cst_73 [1] : vector<8x4xf32> to vector<8xf32>
    %170 = vector.shape_cast %169 : vector<8xf32> to vector<8x1xf32>
    %cst_74 = arith.constant -5.000000e-01 : f32
    %171 = vector.broadcast %cst_74 : f32 to vector<8x1xf32>
    %172 = arith.mulf %171, %170 : vector<8x1xf32>
    %cst_75 = arith.constant 3.67575407 : f32
    %173 = vector.broadcast %cst_75 : f32 to vector<8x1xf32>
    %174 = arith.subf %172, %173 : vector<8x1xf32>
    %175 = arith.addf %174, %164 : vector<8x1xf32>
    %176 = tpu.transpose %175, [1, 0] : vector<8x1xf32> -> vector<1x8xf32>
    %c0_76 = arith.constant 0 : index
    %c0_77 = arith.constant 0 : index
    %c0_78 = arith.constant 0 : index
    %177 = vector.load %arg6[%c0_76, %c0_77, %c0_78] : memref<1x1x8xf32, #tpu.memory_space<vmem>>, vector<1x1x8xf32>
    %178 = vector.shape_cast %177 : vector<1x1x8xf32> to vector<1x8xf32>
    %179 = vector.shape_cast %176 : vector<1x8xf32> to vector<1x1x8xf32>
    tpu.vector_store %arg6[%c0_76, %c0_77, %c0_78], %179 {strides = array<i32>} : memref<1x1x8xf32, #tpu.memory_space<vmem>>, vector<1x1x8xf32>,
    return
  }
  func.func @transform_0(%arg0: i32, %arg1: i32) -> (i32, i32, i32) {
    %c0_i32 = arith.constant 0 : i32
    %c0_i32_0 = arith.constant 0 : i32
    return %arg0, %arg1, %c0_i32 : i32, i32, i32
  }
  func.func @transform_1(%arg0: i32, %arg1: i32) -> (i32, i32, i32) {
    %c0_i32 = arith.constant 0 : i32
    %c0_i32_0 = arith.constant 0 : i32
    %c0_i32_1 = arith.constant 0 : i32
    return %arg0, %c0_i32, %c0_i32_0 : i32, i32, i32
  }
  func.func @transform_2(%arg0: i32, %arg1: i32) -> (i32, i32, i32) {
    %c0_i32 = arith.constant 0 : i32
    %c0_i32_0 = arith.constant 0 : i32
    %c0_i32_1 = arith.constant 0 : i32
    return %arg0, %c0_i32, %c0_i32_0 : i32, i32, i32
  }
  func.func @transform_3(%arg0: i32, %arg1: i32) -> (i32, i32) {
    %c0_i32 = arith.constant 0 : i32
    %c0_i32_0 = arith.constant 0 : i32
    %c0_i32_1 = arith.constant 0 : i32
    return %c0_i32, %c0_i32_0 : i32, i32
  }
  func.func @transform_4(%arg0: i32, %arg1: i32) -> (i32, i32, i32) {
    %c0_i32 = arith.constant 0 : i32
    %c0_i32_0 = arith.constant 0 : i32
    return %arg0, %c0_i32, %arg1 : i32, i32, i32
  }
  func.func @transform_5(%arg0: i32, %arg1: i32) -> (i32, i32, i32, i32) {
    %c0_i32 = arith.constant 0 : i32
    %c0_i32_0 = arith.constant 0 : i32
    %c0_i32_1 = arith.constant 0 : i32
    return %arg0, %c0_i32, %arg1, %c0_i32_0 : i32, i32, i32, i32
  }
}

</mosaic_0001>

<llo_original>
// kernel: nf_list_forward.1
$region0: #{nf_list_forward.1}
  #allocation0 [shape = 'u32[]', space=smem, size = 0x4, offset = 0x4, fixed_abs, tag = 'smem constant byte address 0x4 - core index']
  #allocation1 [shape = 'u32[144,128]{1,0:T(1,128)}', space=vmem, size = 0x12000, scoped, tag = 'internal scratch']
  %s0 = inlined_call_operand.vmem [shape: f32[3,8,4], index: 0, kind: input, shape index: {}]
  %s1 = inlined_call_operand.vmem [shape: f32[3,5,4], index: 1, kind: input, shape index: {}]
  %s2 = inlined_call_operand.vmem [shape: f32[3,5,4], index: 2, kind: input, shape index: {}]
  %s3 = inlined_call_operand.vmem [shape: f32[3,5], index: 3, kind: input, shape index: {}]
  %s4 = inlined_call_operand.vmem [shape: f32[3,1,8], index: 4, kind: output, shape index: {0}]
  %s5 = inlined_call_operand.vmem [shape: f32[3,5,8,4], index: 5, kind: output, shape index: {1}]
  %6 = xla_tuple %s4, %s5
  %s7 = sld [smem:[#allocation0]]
  $region61: #{nf_list_forward.1} parent=0
    _
  %s9 = ssub.s32 1, %s7
  %s10 = scalar_select 0, %s9, %s7
  $region1: #{nf_list_forward.1} parent=0
    #allocation2 [shape = 'u8[2048]{0}', space=smem, size = 0x800, scoped, tag = 'input window, operand 3, single buffered']
    #allocation3 [shape = 's32[2]{0}', space=sflag, size = 0x8, scoped, tag = 'scoped memory for nf_list_forward.1']
    %11 = vsyncpa [#allocation3], 0
    loop: start=0, step=1, limit=5
    $region2: #{nf_list_forward.1} parent=1 // loop_pre_header
      _
    $region3: #{nf_list_forward.1} parent=1 // loop_header
      %s13 = sphi 0, %s17
      %p14 = scmp.ge.s32.totalorder %s13, 5
      %s20 = sphi 0, %s32
      %s21 = sphi 0, %s28
      %s22 = sphi 0, %s20
      %s23 = sphi 0, %s21
      %s24 = sphi 0, %s22
      %s25 = sphi 0, %s23
      %s37 = sphi 0, %s39
      %s40 = sphi 0, %s37
      %s41 = sphi 0, %s40
      %s57 = sphi 0, %s41
      %s63 = sphi 0, %s65
      %s66 = sphi 0, %s63
      %s67 = sphi 0, %s66
      %s83 = sphi 0, %s67
      %s89 = sphi 0, %s91
      %s92 = sphi 0, %s89
      %s93 = sphi 0, %s92
      %s109 = sphi 0, %s93
      %s113 = sphi 0, %s113
      %s115 = sphi 0, %s113
      %s116 = sphi 0, %s115
      %s130 = sphi 0, %s116
      %s138 = sphi 0, %s140
      %s141 = sphi 0, %s138
      %s142 = sphi 0, %s141
      %s158 = sphi 0, %s142
      %s166 = sphi 0, %s168
      %s169 = sphi 0, %s166
      %s170 = sphi 0, %s169
      %s186 = sphi 0, %s170
    $region4: #{nf_list_forward.1} parent=1 // loop_header_branch
      %16 = sbr.rel (%p14) target = $region8
    $region5: #{nf_list_forward.1} parent=1 // loop_body
      %s18 = ssub.s32 %s13, 1
      %s19 = ssub.s32 %s13, 2
      %s26 = sadd.s32 1, %s21
      %p27 = scmp.ge.s32.totalorder %s26, 1
      %s28 = scalar_select %p27, 0, %s26
      %s29 = sadd.s32 1, %s20
      %s30 = scalar_select %p27, %s29, %s20
      %p31 = scmp.ge.s32.totalorder %s30, 3
      %s32 = scalar_select %p31, 0, %s30
      %s33 = ssub.s32 %s20, %s32
      %s34 = ssub.s32 %s21, %s28
      %s35 = sor.u32 %s33, %s34
      %p36 = scmp.eq.s32.totalorder %s35, 0
      %s38 = sadd.s32 %s37, 1
      %s39 = scalar_select %p36, %s37, %s38
      %p42 = pneg %p36
      %p43 = scmp.eq.s32.totalorder %s13, 2
      %p44 = por %p42, %p43
      %p45 = scmp.ne.s32.totalorder %s37, %s40
      %p46 = scmp.eq.s32.totalorder %s13, 0
      %p47 = por %p45, %p46
      %p48 = scmp.ne.s32.totalorder %s37, %s40
      %p49 = scmp.eq.s32.totalorder %s18, 2
      %p50 = por %p48, %p49
      %p51 = scmp.ne.s32.totalorder %s40, %s41
      %p52 = scmp.eq.s32.totalorder %s18, 0
      %p53 = por %p51, %p52
      %p54 = scmp.ne.s32.totalorder %s40, %s41
      %p55 = scmp.eq.s32.totalorder %s19, 2
      %p56 = por %p54, %p55
      %p58 = scmp.ne.s32.totalorder %s41, %s57
      %p59 = scmp.eq.s32.totalorder %s19, 0
      %p60 = por %p58, %p59
      %s61 = ssub.s32 %s20, %s32
      %p62 = scmp.eq.s32.totalorder %s61, 0
      %s64 = sadd.s32 %s63, 1
      %s65 = scalar_select %p62, %s63, %s64
      %p68 = pneg %p62
      %p69 = scmp.eq.s32.totalorder %s13, 2
      %p70 = por %p68, %p69
      %p71 = scmp.ne.s32.totalorder %s63, %s66
      %p72 = scmp.eq.s32.totalorder %s13, 0
      %p73 = por %p71, %p72
      %p74 = scmp.ne.s32.totalorder %s63, %s66
      %p75 = scmp.eq.s32.totalorder %s18, 2
      %p76 = por %p74, %p75
      %p77 = scmp.ne.s32.totalorder %s66, %s67
      %p78 = scmp.eq.s32.totalorder %s18, 0
      %p79 = por %p77, %p78
      %p80 = scmp.ne.s32.totalorder %s66, %s67
      %p81 = scmp.eq.s32.totalorder %s19, 2
      %p82 = por %p80, %p81
      %p84 = scmp.ne.s32.totalorder %s67, %s83
      %p85 = scmp.eq.s32.totalorder %s19, 0
      %p86 = por %p84, %p85
      %s87 = ssub.s32 %s20, %s32
      %p88 = scmp.eq.s32.totalorder %s87, 0
      %s90 = sadd.s32 %s89, 1
      %s91 = scalar_select %p88, %s89, %s90
      %p94 = pneg %p88
      %p95 = scmp.eq.s32.totalorder %s13, 2
      %p96 = por %p94, %p95
      %p97 = scmp.ne.s32.totalorder %s89, %s92
      %p98 = scmp.eq.s32.totalorder %s13, 0
      %p99 = por %p97, %p98
      %p100 = scmp.ne.s32.totalorder %s89, %s92
      %p101 = scmp.eq.s32.totalorder %s18, 2
      %p102 = por %p100, %p101
      %p103 = scmp.ne.s32.totalorder %s92, %s93
      %p104 = scmp.eq.s32.totalorder %s18, 0
      %p105 = por %p103, %p104
      %p106 = scmp.ne.s32.totalorder %s92, %s93
      %p107 = scmp.eq.s32.totalorder %s19, 2
      %p108 = por %p106, %p107
      %p110 = scmp.ne.s32.totalorder %s93, %s109
      %p111 = scmp.eq.s32.totalorder %s19, 0
      %p112 = por %p110, %p111
      %s114 = sadd.s32 %s113, 1
      %p117 = scmp.eq.s32.totalorder %s13, 2
      %p118 = scmp.ne.s32.totalorder %s113, %s115
      %p119 = scmp.eq.s32.totalorder %s13, 0
      %p120 = por %p118, %p119
      %p121 = scmp.ne.s32.totalorder %s113, %s115
      %p122 = scmp.eq.s32.totalorder %s18, 2
      %p123 = por %p121, %p122
      %p124 = scmp.ne.s32.totalorder %s115, %s116
      %p125 = scmp.eq.s32.totalorder %s18, 0
      %p126 = por %p124, %p125
      %p127 = scmp.ne.s32.totalorder %s115, %s116
      %p128 = scmp.eq.s32.totalorder %s19, 2
      %p129 = por %p127, %p128
      %p131 = scmp.ne.s32.totalorder %s116, %s130
      %p132 = scmp.eq.s32.totalorder %s19, 0
      %p133 = por %p131, %p132
      %s134 = ssub.s32 %s20, %s32
      %s135 = ssub.s32 %s21, %s28
      %s136 = sor.u32 %s134, %s135
      %p137 = scmp.eq.s32.totalorder %s136, 0
      %s139 = sadd.s32 %s138, 1
      %s140 = scalar_select %p137, %s138, %s139
      %p143 = pneg %p137
      %p144 = scmp.eq.s32.totalorder %s13, 2
      %p145 = por %p143, %p144
      %p146 = scmp.ne.s32.totalorder %s138, %s141
      %p147 = scmp.eq.s32.totalorder %s13, 0
      %p148 = por %p146, %p147
      %p149 = scmp.ne.s32.totalorder %s138, %s141
      %p150 = scmp.eq.s32.totalorder %s18, 2
      %p151 = por %p149, %p150
      %p152 = scmp.ne.s32.totalorder %s141, %s142
      %p153 = scmp.eq.s32.totalorder %s18, 0
      %p154 = por %p152, %p153
      %p155 = scmp.ne.s32.totalorder %s141, %s142
      %p156 = scmp.eq.s32.totalorder %s19, 2
      %p157 = por %p155, %p156
      %p159 = scmp.ne.s32.totalorder %s142, %s158
      %p160 = scmp.eq.s32.totalorder %s19, 0
      %p161 = por %p159, %p160
      %s162 = ssub.s32 %s20, %s32
      %s163 = ssub.s32 %s21, %s28
      %s164 = sor.u32 %s162, %s163
      %p165 = scmp.eq.s32.totalorder %s164, 0
      %s167 = sadd.s32 %s166, 1
      %s168 = scalar_select %p165, %s166, %s167
      %p171 = pneg %p165
      %p172 = scmp.eq.s32.totalorder %s13, 2
      %p173 = por %p171, %p172
      %p174 = scmp.ne.s32.totalorder %s166, %s169
      %p175 = scmp.eq.s32.totalorder %s13, 0
      %p176 = por %p174, %p175
      %p177 = scmp.ne.s32.totalorder %s166, %s169
      %p178 = scmp.eq.s32.totalorder %s18, 2
      %p179 = por %p177, %p178
      %p180 = scmp.ne.s32.totalorder %s169, %s170
      %p181 = scmp.eq.s32.totalorder %s18, 0
      %p182 = por %p180, %p181
      %p183 = scmp.ne.s32.totalorder %s169, %s170
      %p184 = scmp.eq.s32.totalorder %s19, 2
      %p185 = por %p183, %p184
      %p187 = scmp.ne.s32.totalorder %s170, %s186
      %p188 = scmp.eq.s32.totalorder %s19, 0
      %p189 = por %p187, %p188
      %p190 = scmp.le.s32.totalorder 1, %s13
      %p191 = scmp.lt.s32.totalorder %s13, 4
      %p192 = pnand %p190, %p191
      %p193 = pneg %p192
      // Predicated region
      $region9: #{nf_list_forward.1} parent=5 // pred_check
        _
      $region10: #{nf_list_forward.1} parent=5 // pred_check_branch
        %195 = sbr.rel (%p192) target = $region12
      $region11: #{nf_list_forward.1} parent=5 // pred_region
        %s196 = ssub.s32 %s13, 1
        // Predicated region
        $region13: #{nf_list_forward.1} parent=11 // pred_check
          %p197 = pneg %p126
        $region14: #{nf_list_forward.1} parent=11 // pred_check_branch
          %199 = sbr.rel (%p197) target = $region16
        $region15: #{nf_list_forward.1} parent=11 // pred_region
          %s201 = ssub.s32 64, 64
          %202 = vsyncadd [#allocation3], %s201
          %s204 = sshll.u32 %s3, 4
          %s205 = int_to_ptr.vmem [resolvable:$true] %s204
          %207 = dma.vmem_to_smem %s205, 64, [#allocation2], [#allocation3]
        $region16: #{nf_list_forward.1} parent=11 // pred_fallthru
          _
      $region12: #{nf_list_forward.1} parent=5 // pred_fallthru
        _
      %p208 = scmp.lt.s32.totalorder %s13, 3
      // Predicated region
      $region17: #{nf_list_forward.1} parent=5 // pred_check
        %p209 = pneg %p208
      $region18: #{nf_list_forward.1} parent=5 // pred_check_branch
        %211 = sbr.rel (%p209) target = $region20
      $region19: #{nf_list_forward.1} parent=5 // pred_region
        // Predicated region
        $region21: #{nf_list_forward.1} parent=19 // pred_check
          %p212 = pneg %p47
        $region22: #{nf_list_forward.1} parent=19 // pred_check_branch
          %214 = sbr.rel (%p212) target = $region24
        $region23: #{nf_list_forward.1} parent=19 // pred_region
          %p215 = scmp.lt.s32.totalorder %s20, 2
          %s216 = scalar_select %p215, %s20, 2
          %p217 = scmp.lt.s32.totalorder %s21, 0
          %s218 = scalar_select %p217, %s21, 0
          %s219 = sadd.s32 %s218, %s216
          %s220 = smul.addr %s219, 8
          %s221 = scalar_lea.vmem %s0, %s220
        $region24: #{nf_list_forward.1} parent=19 // pred_fallthru
          _
        // Predicated region
        $region25: #{nf_list_forward.1} parent=19 // pred_check
          %p222 = pneg %p73
        $region26: #{nf_list_forward.1} parent=19 // pred_check_branch
          %224 = sbr.rel (%p222) target = $region28
        $region27: #{nf_list_forward.1} parent=19 // pred_region
          %p225 = scmp.lt.s32.totalorder %s20, 2
          %s226 = scalar_select %p225, %s20, 2
          %s227 = smul.addr %s226, 8
          %s228 = scalar_lea.vmem %s1, %s227
        $region28: #{nf_list_forward.1} parent=19 // pred_fallthru
          _
        // Predicated region
        $region29: #{nf_list_forward.1} parent=19 // pred_check
          %p229 = pneg %p99
        $region30: #{nf_list_forward.1} parent=19 // pred_check_branch
          %231 = sbr.rel (%p229) target = $region32
        $region31: #{nf_list_forward.1} parent=19 // pred_region
          %p232 = scmp.lt.s32.totalorder %s20, 2
          %s233 = scalar_select %p232, %s20, 2
          %s234 = smul.addr %s233, 8
          %s235 = scalar_lea.vmem %s2, %s234
        $region32: #{nf_list_forward.1} parent=19 // pred_fallthru
          _
      $region20: #{nf_list_forward.1} parent=5 // pred_fallthru
        _
      %p236 = scmp.le.s32.totalorder 1, %s13
      %p237 = scmp.lt.s32.totalorder %s13, 4
      %p238 = pnand %p236, %p237
      %p239 = pneg %p238
      // Predicated region
      $region33: #{nf_list_forward.1} parent=5 // pred_check
        _
      $region34: #{nf_list_forward.1} parent=5 // pred_check_branch
        %241 = sbr.rel (%p238) target = $region36
      $region35: #{nf_list_forward.1} parent=5 // pred_region
        %s242 = ssub.s32 %s13, 1
        // Predicated region
        $region37: #{nf_list_forward.1} parent=35 // pred_check
          %p243 = pneg %p126
        $region38: #{nf_list_forward.1} parent=35 // pred_check_branch
          %245 = sbr.rel (%p243) target = $region40
        $region39: #{nf_list_forward.1} parent=35 // pred_region
          %246 = dma.done [#allocation3], 64
        $region40: #{nf_list_forward.1} parent=35 // pred_fallthru
          _
        %247 = sfence
        %p248 = scmp.lt.s32.totalorder %s22, 2
        %s249 = scalar_select %p248, %s22, 2
        %p250 = scmp.lt.s32.totalorder %s23, 0
        %s251 = scalar_select %p250, %s23, 0
        %s252 = sadd.s32 %s251, %s249
        %s253 = smul.addr %s252, 8
        %s254 = scalar_lea.vmem %s0, %s253
        %p255 = pneg %p53
        %p256 = pneg %p50
        %p257 = scmp.lt.s32.totalorder %s22, 2
        %s258 = scalar_select %p257, %s22, 2
        %s259 = smul.addr %s258, 8
        %s260 = scalar_lea.vmem %s1, %s259
        %p261 = pneg %p79
        %p262 = pneg %p76
        %p263 = scmp.lt.s32.totalorder %s22, 2
        %s264 = scalar_select %p263, %s22, 2
        %s265 = smul.addr %s264, 8
        %s266 = scalar_lea.vmem %s2, %s265
        %p267 = pneg %p105
        %p268 = pneg %p102
        %p269 = pneg %p126
        %p270 = pneg %p123
        %p271 = pneg %p154
        %p272 = pneg %p151
        %p273 = scmp.lt.s32.totalorder %s22, 2
        %s274 = scalar_select %p273, %s22, 2
        %p275 = scmp.lt.s32.totalorder %s23, 0
        %s276 = scalar_select %p275, %s23, 0
        %s277 = sadd.s32 %s276, %s274
        %s278 = scalar_lea.vmem %s4, %s277
        %p279 = pneg %p182
        %p280 = pneg %p179
        %p281 = scmp.lt.s32.totalorder %s22, 2
        %s282 = scalar_select %p281, %s22, 2
        %p283 = scmp.lt.s32.totalorder %s23, 0
        %s284 = scalar_select %p283, %s23, 0
        %s285 = smul.addr %s282, 5
        %s286 = sadd.s32 %s284, %s285
        %s287 = smul.addr %s286, 8
        %s288 = scalar_lea.vmem %s5, %s287
        %p289 = scmp.lt.s32.totalorder %s22, 2
        %s290 = scalar_select %p289, %s22, 2
        %p291 = scmp.lt.s32.totalorder %s23, 0
        %s292 = scalar_select %p291, %s23, 0
        %s293 = sadd.s32 %s292, %s290
        %s294 = smul.addr %s293, 8
        %s295 = scalar_lea.vmem %s0, %s294
        %p296 = scmp.lt.s32.totalorder %s22, 2
        %s297 = scalar_select %p296, %s22, 2
        %s298 = smul.addr %s297, 8
        %s299 = scalar_lea.vmem %s1, %s298
        %p300 = scmp.lt.s32.totalorder %s22, 2
        %s301 = scalar_select %p300, %s22, 2
        %s302 = smul.addr %s301, 8
        %s303 = scalar_lea.vmem %s2, %s302
        %p304 = scmp.lt.s32.totalorder %s22, 2
        %s305 = scalar_select %p304, %s22, 2
        %p306 = scmp.lt.s32.totalorder %s23, 0
        %s307 = scalar_select %p306, %s23, 0
        %s308 = sadd.s32 %s307, %s305
        %s309 = scalar_lea.vmem %s4, %s308
        %p310 = scmp.lt.s32.totalorder %s22, 2
        %s311 = scalar_select %p310, %s22, 2
        %p312 = scmp.lt.s32.totalorder %s23, 0
        %s313 = scalar_select %p312, %s23, 0
        %s314 = smul.addr %s311, 5
        %s315 = sadd.s32 %s313, %s314
        %s316 = smul.addr %s315, 8
        %s317 = scalar_lea.vmem %s5, %s316
        %v318 = vld [vmem:[%s295] sm:$0xff]
        %v319 = vld [vmem:[%s299] sm:$0x1]
        %v320 = vld [vmem:[%s303] sm:$0x1]
        %s321 = smul.u32 %s22, 128
        %s322 = sld [smem:[#allocation2 + %s321]]
        %v323 = vlaneseq
        %v324 = vshrl.u32 %v323, 7
        %v325 = vsub.s32 0, %v324
        %v326 = vrot.slane %v319, %v325
        %v327 = vmul.f32 %v318, %v326
        %vm328 = vcmask 31744
        %v329 = vsel %vm328, %v327, 0.0
        %330 = vadd.xlane.f32.xlu0 %v329
        %v331 = vpop.xlane.xlu0 %330
        %v332 = vstv %s322
        %v333 = vadd.f32 %v331, %v332
        %v334 = vtanh.pop %v333
        %v335 = vlaneseq
        %v336 = vshrl.u32 %v335, 7
        %v337 = vsub.s32 0, %v336
        %v338 = vrot.slane %v320, %v337
        %v339 = vmul.f32 %v338, %v334
        %v340 = vadd.f32 %v318, %v339
        %v341 = vmul.f32 %v320, %v319
        %vm342 = vcmask 24576
        %v343 = vsel %vm342, %v341, 0.0
        %344 = vadd.xlane.f32.xlu0 %v343
        %v345 = vpop.xlane.xlu0 %344
        %v346 = vmul.f32 %v334, %v334
        %v347 = vsub.f32 1.0, %v346
        %v348 = vlaneseq
        %v349 = vshrl.u32 %v348, 7
        %v350 = vsub.s32 0, %v349
        %v351 = vrot.slane %v345, %v350
        %v352 = vmul.f32 %v351, %v347
        %v353 = vadd.f32 %v352, 1.0
        %v354 = vand.u32 2147483647, %v353
        %v355 = vlog2.pop %v354
        %v356 = vmul.f32 %v355, 0.6931472
        %v357 = vadd.f32 %v356, 0.0
        %358 = vst.msk [vmem:[%s317] sm:$0xff] %vm328, %v340
        %v359 = vld [vmem:[%s299 + $0x1] sm:$0x1]
        %v360 = vld [vmem:[%s303 + $0x1] sm:$0x1]
        %s361 = sadd.s32 %s321, 1
        %s362 = sld [smem:[#allocation2 + %s361]]
        %v363 = vlaneseq
        %v364 = vshrl.u32 %v363, 7
        %v365 = vsub.s32 0, %v364
        %v366 = vrot.slane %v359, %v365
        %v367 = vmul.f32 %v340, %v366
        %v368 = vsel %vm328, %v367, 0.0
        %369 = vadd.xlane.f32.xlu0 %v368
        %v370 = vpop.xlane.xlu0 %369
        %v371 = vstv %s362
        %v372 = vadd.f32 %v370, %v371
        %v373 = vtanh.pop %v372
        %v374 = vlaneseq
        %v375 = vshrl.u32 %v374, 7
        %v376 = vsub.s32 0, %v375
        %v377 = vrot.slane %v360, %v376
        %v378 = vmul.f32 %v377, %v373
        %v379 = vadd.f32 %v340, %v378
        %v380 = vmul.f32 %v360, %v359
        %v381 = vsel %vm342, %v380, 0.0
        %382 = vadd.xlane.f32.xlu0 %v381
        %v383 = vpop.xlane.xlu0 %382
        %v384 = vmul.f32 %v373, %v373
        %v385 = vsub.f32 1.0, %v384
        %v386 = vlaneseq
        %v387 = vshrl.u32 %v386, 7
        %v388 = vsub.s32 0, %v387
        %v389 = vrot.slane %v383, %v388
        %v390 = vmul.f32 %v389, %v385
        %v391 = vadd.f32 %v390, 1.0
        %v392 = vand.u32 2147483647, %v391
        %v393 = vlog2.pop %v392
        %v394 = vmul.f32 %v393, 0.6931472
        %v395 = vadd.f32 %v357, %v394
        %s396 = scalar_lea.vmem %s317, 8
        %397 = vst.msk [vmem:[%s396] sm:$0xff] %vm328, %v379
        %v398 = vld [vmem:[%s299 + $0x2] sm:$0x1]
        %v399 = vld [vmem:[%s303 + $0x2] sm:$0x1]
        %s400 = sadd.s32 %s321, 2
        %s401 = sld [smem:[#allocation2 + %s400]]
        %v402 = vlaneseq
        %v403 = vshrl.u32 %v402, 7
        %v404 = vsub.s32 0, %v403
        %v405 = vrot.slane %v398, %v404
        %v406 = vmul.f32 %v379, %v405
        %v407 = vsel %vm328, %v406, 0.0
        %408 = vadd.xlane.f32.xlu0 %v407
        %v409 = vpop.xlane.xlu0 %408
        %v410 = vstv %s401
        %v411 = vadd.f32 %v409, %v410
        %v412 = vtanh.pop %v411
        %v413 = vlaneseq
        %v414 = vshrl.u32 %v413, 7
        %v415 = vsub.s32 0, %v414
        %v416 = vrot.slane %v399, %v415
        %v417 = vmul.f32 %v416, %v412
        %v418 = vadd.f32 %v379, %v417
        %v419 = vmul.f32 %v399, %v398
        %v420 = vsel %vm342, %v419, 0.0
        %421 = vadd.xlane.f32.xlu0 %v420
        %v422 = vpop.xlane.xlu0 %421
        %v423 = vmul.f32 %v412, %v412
        %v424 = vsub.f32 1.0, %v423
        %v425 = vlaneseq
        %v426 = vshrl.u32 %v425, 7
        %v427 = vsub.s32 0, %v426
        %v428 = vrot.slane %v422, %v427
        %v429 = vmul.f32 %v428, %v424
        %v430 = vadd.f32 %v429, 1.0
        %v431 = vand.u32 2147483647, %v430
        %v432 = vlog2.pop %v431
        %v433 = vmul.f32 %v432, 0.6931472
        %v434 = vadd.f32 %v395, %v433
        %s435 = scalar_lea.vmem %s317, 16
        %436 = vst.msk [vmem:[%s435] sm:$0xff] %vm328, %v418
        %v437 = vld [vmem:[%s299 + $0x3] sm:$0x1]
        %v438 = vld [vmem:[%s303 + $0x3] sm:$0x1]
        %s439 = sadd.s32 %s321, 3
        %s440 = sld [smem:[#allocation2 + %s439]]
        %v441 = vlaneseq
        %v442 = vshrl.u32 %v441, 7
        %v443 = vsub.s32 0, %v442
        %v444 = vrot.slane %v437, %v443
        %v445 = vmul.f32 %v418, %v444
        %v446 = vsel %vm328, %v445, 0.0
        %447 = vadd.xlane.f32.xlu0 %v446
        %v448 = vpop.xlane.xlu0 %447
        %v449 = vstv %s440
        %v450 = vadd.f32 %v448, %v449
        %v451 = vtanh.pop %v450
        %v452 = vlaneseq
        %v453 = vshrl.u32 %v452, 7
        %v454 = vsub.s32 0, %v453
        %v455 = vrot.slane %v438, %v454
        %v456 = vmul.f32 %v455, %v451
        %v457 = vadd.f32 %v418, %v456
        %v458 = vmul.f32 %v438, %v437
        %v459 = vsel %vm342, %v458, 0.0
        %460 = vadd.xlane.f32.xlu0 %v459
        %v461 = vpop.xlane.xlu0 %460
        %v462 = vmul.f32 %v451, %v451
        %v463 = vsub.f32 1.0, %v462
        %v464 = vlaneseq
        %v465 = vshrl.u32 %v464, 7
        %v466 = vsub.s32 0, %v465
        %v467 = vrot.slane %v461, %v466
        %v468 = vmul.f32 %v467, %v463
        %v469 = vadd.f32 %v468, 1.0
        %v470 = vand.u32 2147483647, %v469
        %v471 = vlog2.pop %v470
        %v472 = vmul.f32 %v471, 0.6931472
        %v473 = vadd.f32 %v434, %v472
        %s474 = scalar_lea.vmem %s317, 24
        %475 = vst.msk [vmem:[%s474] sm:$0xff] %vm328, %v457
        %v476 = vld [vmem:[%s299 + $0x4] sm:$0x1]
        %v477 = vld [vmem:[%s303 + $0x4] sm:$0x1]
        %s478 = sadd.s32 %s321, 4
        %s479 = sld [smem:[#allocation2 + %s478]]
        %v480 = vlaneseq
        %v481 = vshrl.u32 %v480, 7
        %v482 = vsub.s32 0, %v481
        %v483 = vrot.slane %v476, %v482
        %v484 = vmul.f32 %v457, %v483
        %v485 = vsel %vm328, %v484, 0.0
        %486 = vadd.xlane.f32.xlu0 %v485
        %v487 = vpop.xlane.xlu0 %486
        %v488 = vstv %s479
        %v489 = vadd.f32 %v487, %v488
        %v490 = vtanh.pop %v489
        %v491 = vlaneseq
        %v492 = vshrl.u32 %v491, 7
        %v493 = vsub.s32 0, %v492
        %v494 = vrot.slane %v477, %v493
        %v495 = vmul.f32 %v494, %v490
        %v496 = vadd.f32 %v457, %v495
        %v497 = vmul.f32 %v477, %v476
        %v498 = vsel %vm342, %v497, 0.0
        %499 = vadd.xlane.f32.xlu0 %v498
        %v500 = vpop.xlane.xlu0 %499
        %v501 = vmul.f32 %v490, %v490
        %v502 = vsub.f32 1.0, %v501
        %v503 = vlaneseq
        %v504 = vshrl.u32 %v503, 7
        %v505 = vsub.s32 0, %v504
        %v506 = vrot.slane %v500, %v505
        %v507 = vmul.f32 %v506, %v502
        %v508 = vadd.f32 %v507, 1.0
        %v509 = vand.u32 2147483647, %v508
        %v510 = vlog2.pop %v509
        %v511 = vmul.f32 %v510, 0.6931472
        %v512 = vadd.f32 %v473, %v511
        %s513 = scalar_lea.vmem %s317, 32
        %514 = vst.msk [vmem:[%s513] sm:$0xff] %vm328, %v496
        %v515 = vmul.f32 %v496, %v496
        %v516 = vsel %vm328, %v515, 0.0
        %517 = vadd.xlane.f32.xlu0 %v516
        %v518 = vpop.xlane.xlu0 %517
        %v519 = vmul.f32 %v518, -0.5
        %v520 = vsub.f32 %v519, 3.675754
        %v521 = vadd.f32 %v520, %v512
        %522 = vxpose.xlu0.b32.start [1/16] %v521, 128
        %523 = vxpose.xlu0.b32.cont [2/16] 0.0, 128
        %524 = vxpose.xlu0.b32.cont [3/16] 0.0, 128
        %525 = vxpose.xlu0.b32.cont [4/16] 0.0, 128
        %526 = vxpose.xlu0.b32.cont [5/16] 0.0, 128
        %527 = vxpose.xlu0.b32.cont [6/16] 0.0, 128
        %528 = vxpose.xlu0.b32.cont [7/16] 0.0, 128
        %529 = vxpose.xlu0.b32.cont [8/16] 0.0, 128
        %530 = vxpose.xlu0.b32.cont [9/16] 0.0, 128
        %531 = vxpose.xlu0.b32.cont [10/16] 0.0, 128
        %532 = vxpose.xlu0.b32.cont [11/16] 0.0, 128
        %533 = vxpose.xlu0.b32.cont [12/16] 0.0, 128
        %534 = vxpose.xlu0.b32.cont [13/16] 0.0, 128
        %535 = vxpose.xlu0.b32.cont [14/16] 0.0, 128
        %536 = vxpose.xlu0.b32.cont [15/16] 0.0, 128
        %537 = vxpose.xlu0.b32.end [16/16] 0.0, 128
        %v538 = vpop.trf.xlu0
        %v539 = vpop.trf.xlu0
        %v540 = vpop.trf.xlu0
        %v541 = vpop.trf.xlu0
        %v542 = vpop.trf.xlu0
        %v543 = vpop.trf.xlu0
        %v544 = vpop.trf.xlu0
        %v545 = vpop.trf.xlu0
        %v546 = vpop.trf.xlu0
        %v547 = vpop.trf.xlu0
        %v548 = vpop.trf.xlu0
        %v549 = vpop.trf.xlu0
        %v550 = vpop.trf.xlu0
        %v551 = vpop.trf.xlu0
        %v552 = vpop.trf.xlu0
        %v553 = vpop.trf.xlu0
        %vm554 = vcmask 57344
        %555 = vst.msk [vmem:[%s309] sm:$0x1] %vm554, %v538
        %p556 = scmp.lt.s32.totalorder %s22, 2
        %s557 = scalar_select %p556, %s22, 2
        %p558 = scmp.lt.s32.totalorder %s23, 0
        %s559 = scalar_select %p558, %s23, 0
        %s560 = sadd.s32 %s559, %s557
        %s561 = scalar_lea.vmem %s4, %s560
        %p562 = scmp.lt.s32.totalorder %s22, 2
        %s563 = scalar_select %p562, %s22, 2
        %p564 = scmp.lt.s32.totalorder %s23, 0
        %s565 = scalar_select %p564, %s23, 0
        %s566 = smul.addr %s563, 5
        %s567 = sadd.s32 %s565, %s566
        %s568 = smul.addr %s567, 8
        %s569 = scalar_lea.vmem %s5, %s568
        // Predicated region
        $region41: #{nf_list_forward.1} parent=35 // pred_check
          %p570 = pneg %p151
        $region42: #{nf_list_forward.1} parent=35 // pred_check_branch
          %572 = sbr.rel (%p570) target = $region44
        $region43: #{nf_list_forward.1} parent=35 // pred_region
          _
        $region44: #{nf_list_forward.1} parent=35 // pred_fallthru
          _
        // Predicated region
        $region45: #{nf_list_forward.1} parent=35 // pred_check
          %p573 = pneg %p179
        $region46: #{nf_list_forward.1} parent=35 // pred_check_branch
          %575 = sbr.rel (%p573) target = $region48
        $region47: #{nf_list_forward.1} parent=35 // pred_region
          _
        $region48: #{nf_list_forward.1} parent=35 // pred_fallthru
          _
      $region36: #{nf_list_forward.1} parent=5 // pred_fallthru
        _
      %p576 = scmp.le.s32.totalorder 2, %s13
      // Predicated region
      $region49: #{nf_list_forward.1} parent=5 // pred_check
        %p577 = pneg %p576
      $region50: #{nf_list_forward.1} parent=5 // pred_check_branch
        %579 = sbr.rel (%p577) target = $region52
      $region51: #{nf_list_forward.1} parent=5 // pred_region
        %s580 = ssub.s32 %s13, 2
        // Predicated region
        $region53: #{nf_list_forward.1} parent=51 // pred_check
          %p581 = pneg %p157
        $region54: #{nf_list_forward.1} parent=51 // pred_check_branch
          %583 = sbr.rel (%p581) target = $region56
        $region55: #{nf_list_forward.1} parent=51 // pred_region
          %p584 = scmp.lt.s32.totalorder %s24, 2
          %s585 = scalar_select %p584, %s24, 2
          %p586 = scmp.lt.s32.totalorder %s25, 0
          %s587 = scalar_select %p586, %s25, 0
          %s588 = sadd.s32 %s587, %s585
          %s589 = scalar_lea.vmem %s4, %s588
        $region56: #{nf_list_forward.1} parent=51 // pred_fallthru
          _
        // Predicated region
        $region57: #{nf_list_forward.1} parent=51 // pred_check
          %p590 = pneg %p185
        $region58: #{nf_list_forward.1} parent=51 // pred_check_branch
          %592 = sbr.rel (%p590) target = $region60
        $region59: #{nf_list_forward.1} parent=51 // pred_region
          %p593 = scmp.lt.s32.totalorder %s24, 2
          %s594 = scalar_select %p593, %s24, 2
          %p595 = scmp.lt.s32.totalorder %s25, 0
          %s596 = scalar_select %p595, %s25, 0
          %s597 = smul.addr %s594, 5
          %s598 = sadd.s32 %s596, %s597
          %s599 = smul.addr %s598, 8
          %s600 = scalar_lea.vmem %s5, %s599
        $region60: #{nf_list_forward.1} parent=51 // pred_fallthru
          _
      $region52: #{nf_list_forward.1} parent=5 // pred_fallthru
        _
    $region6: #{nf_list_forward.1} parent=1 // loop_footer
      %s17 = sadd.s32 1, %s13
    $region7: #{nf_list_forward.1} parent=1 // loop_footer_branch
      %12 = sbr.rel target = $region3
    $region8: #{nf_list_forward.1} parent=1 // loop_exit
      _
    %601 = vsyncpa [#allocation3], 1
    %s602 = scalar_lea.sflag [#allocation3], 1
    %603 = vsyncpa %s602, 1

</llo_original>
